<compile_context>
chip_gen: v7x
topology: tpu7x:2x2x1
jax: 0.10.0
libtpu: 0.0.40
codegen_flags: <defaults>
</compile_context>

<pallas_src>
import functools
import math

import jax
import jax.numpy as jnp
from jax.experimental import pallas as pl
from jax.experimental.pallas import tpu as pltpu


def _head_kernel(x_ref, w1_ref, b1_ref, w2_ref, b2_ref, o_ref, *, compute_dtype):
    # x_ref : (tm, D)  row tile of the flattened features (native dtype)
    # w1_ref: (D, D)   dense weight stored (in, out)
    # b1_ref: (1, D)   dense bias (f32)
    # w2_ref: (1, D)   out_proj weight row (f32)
    # b2_ref: (1,)     out_proj bias, SMEM scalar (f32)
    # o_ref : (1, tm)  lane-dense output tile
    x = x_ref[...]
    if compute_dtype is not None and x.dtype != compute_dtype:
        x = x.astype(compute_dtype)  # in-kernel VPU cast, hidden under the MXU
    h = jnp.tanh(
        jnp.dot(x, w1_ref[...], preferred_element_type=jnp.float32)
        + b1_ref[...].astype(jnp.float32)
    )
    # dim -> 1 projection as VPU multiply + lane reduction (keeps the MXU for
    # the dominant matmul).  The (tm,) -> (1, tm) relayout is an XLU move that
    # is off the critical path here; keeps the output store lane-dense.
    y = jnp.sum(h * w2_ref[...].astype(jnp.float32), axis=1) + b2_ref[0]
    o_ref[...] = y[None, :].astype(o_ref.dtype)


def _round_up(x, m):
    return ((x + m - 1) // m) * m


def _vmem_bytes(tm, D, x_sz, w_sz, o_sz):
    return (2 * tm * D * x_sz        # x tile, double-buffered
            + 2 * tm * D * 4         # in-kernel cast / f32 h intermediates
            + 2 * D * D * w_sz       # W1 (conservatively counted at 2 buffers)
            + 4 * D * 4              # b1 / w2 rows
            + 2 * tm * o_sz)         # output tiles


def sequence_positive_output_head(features, w1, b1, w2, b2, *, tile_m=512,
                                  compute_dtype=jnp.bfloat16):
    """features: [B, S, D].  w1: (D, D) stored (in, out) (PyTorch
    dense.weight.T), b1: (D,), w2: (D,), b2: (1,).  Returns [B, S]."""
    B, S, D = features.shape
    M = B * S

    x2d = features.reshape(M, D)               # no copy, no pad, no host cast

    w1_k = w1 if compute_dtype is None else w1.astype(compute_dtype)
    b1_row = b1.reshape(1, D).astype(jnp.float32)
    w2_row = w2.reshape(1, D).astype(jnp.float32)
    b2_s = b2.reshape(1).astype(jnp.float32)

    # VMEM budget: ~80% of the physical per-TensorCore VMEM.
    try:
        vmem_cap = int(pltpu.get_tpu_info().vmem_capacity_bytes)
    except Exception:
        vmem_cap = 60 * 1024 * 1024
    budget = int(vmem_cap * 0.8)

    x_sz = x2d.dtype.itemsize
    w_sz = w1_k.dtype.itemsize
    o_sz = features.dtype.itemsize

    # Row tile: big tiles for real workloads; >=2 grid steps when possible so
    # both v7x TensorCores get 'parallel' work; full extent for tiny inputs.
    tile_m = _round_up(max(int(tile_m), 128), 128)
    if M >= tile_m:
        tm = tile_m
    elif M >= 256:
        tm = _round_up(pl.cdiv(M, 2), 128)     # two lane-dense row tiles
    else:
        tm = M                                 # single full-extent block
    while tm > 128 and tm % 128 == 0 and _vmem_bytes(tm, D, x_sz, w_sz, o_sz) > budget:
        tm //= 2

    grid = (pl.cdiv(M, tm),)

    vmem_limit = int(min(budget,
                         max(32 * 1024 * 1024,
                             2 * _vmem_bytes(tm, D, x_sz, w_sz, o_sz))))

    cost = pl.CostEstimate(
        flops=2 * M * D * D + 3 * M * D,
        transcendentals=M * D,
        bytes_accessed=M * D * x_sz + D * D * w_sz + 12 * D + M * o_sz,
    )

    kernel = functools.partial(_head_kernel, compute_dtype=compute_dtype)
    out_shape = jax.ShapeDtypeStruct((1, M), features.dtype)

    def build(weight_buffers):
        wkw = ({} if weight_buffers is None
               else dict(pipeline_mode=pl.Buffered(weight_buffers)))
        return pl.pallas_call(
            kernel,
            out_shape=out_shape,
            grid_spec=pltpu.PrefetchScalarGridSpec(
                num_scalar_prefetch=0,
                grid=grid,
                in_specs=[
                    pl.BlockSpec((tm, D), lambda i: (i, 0)),            # x rows
                    pl.BlockSpec((D, D), lambda i: (0, 0), **wkw),      # W1
                    pl.BlockSpec((1, D), lambda i: (0, 0), **wkw),      # b1
                    pl.BlockSpec((1, D), lambda i: (0, 0), **wkw),      # w2
                    pl.BlockSpec(memory_space=pltpu.MemorySpace.SMEM),  # b2
                ],
                out_specs=pl.BlockSpec((1, tm), lambda i: (0, i)),      # lane-dense
            ),
            compiler_params=pltpu.CompilerParams(
                dimension_semantics=("parallel",),
                vmem_limit_bytes=vmem_limit,
            ),
            cost_estimate=cost,
        )

    args = (x2d, w1_k, b1_row, w2_row, b2_s)
    try:
        # Single-buffer the VMEM-resident weights (constant index_maps).
        out = build(1)(*args)
    except Exception:
        # Fallback for jax versions that reject pipeline_mode=pl.Buffered(1).
        out = build(None)(*args)

    return out.reshape(B, S)


def init_params(dim, key):
    """Deterministic init matching nn.Linear defaults (uniform +/- 1/sqrt(fan_in)).
    w1 is stored (in, out) = PyTorch dense.weight.T; w2 is the (dim,) row of
    out_proj.weight."""
    k1, k2, k3, k4 = jax.random.split(key, 4)
    bound = 1.0 / math.sqrt(dim)
    w1 = jax.random.uniform(k1, (dim, dim), jnp.float32, -bound, bound)
    b1 = jax.random.uniform(k2, (dim,), jnp.float32, -bound, bound)
    w2 = jax.random.uniform(k3, (dim,), jnp.float32, -bound, bound)
    b2 = jax.random.uniform(k4, (1,), jnp.float32, -bound, bound)
    return w1, b1, w2, b2


def reference(features, w1, b1, w2, b2):
    h = jnp.tanh(features @ w1 + b1)
    return h @ w2 + b2[0]


if __name__ == "__main__":
    # Small shapes consistent with the module: batch=2, seq=8, hidden=32.
    # (At this toy size the kernel is launch-overhead bound; it pays off at
    # production D >= 512 and thousands of rows.)
    B, S, D = 2, 8, 32
    key = jax.random.PRNGKey(0)
    k_x, k_p = jax.random.split(key)
    features = jax.random.normal(k_x, (B, S, D), jnp.float32)
    w1, b1, w2, b2 = init_params(D, k_p)

    # dropout=0.0 in the module -> nn.Identity(); nothing to implement.
    ref = reference(features, w1, b1, w2, b2)

    # Default path: bf16 MXU matmul with f32 accumulation.
    out_bf16 = jax.block_until_ready(
        sequence_positive_output_head(features, w1, b1, w2, b2))
    assert out_bf16.shape == (B, S)
    assert jnp.allclose(out_bf16, ref, atol=2e-2, rtol=2e-2), "bf16 path mismatch"

    # Exact f32 path.
    out_f32 = jax.block_until_ready(
        sequence_positive_output_head(features, w1, b1, w2, b2,
                                      compute_dtype=None))
    assert out_f32.shape == (B, S)
    assert jnp.allclose(out_f32, ref, atol=1e-4, rtol=1e-4), "f32 path mismatch"

    print("KERNEL_OK")
</pallas_src>

<mosaic_0001>
module attributes {stable_mosaic.version = 11 : i64} {
  func.func @_head_kernel(%arg0: i32, %arg1: memref<16x32xf32, #tpu.memory_space<vmem>>, %arg2: memref<32x32xbf16, #tpu.memory_space<vmem>>, %arg3: memref<1x32xf32, #tpu.memory_space<vmem>>, %arg4: memref<1x32xf32, #tpu.memory_space<vmem>>, %arg5: memref<1xf32, #tpu.memory_space<smem>>, %arg6: memref<1x16xf32, #tpu.memory_space<vmem>>) attributes {dimension_semantics = [#tpu.dimension_semantics<parallel>], iteration_bounds = array<i64: 1>, scalar_prefetch = 0 : i64, scratch_operands = 0 : i64, tpu.core_type = #tpu.core_type<tc>, window_params = [{transform_indices = @transform_0, window_bounds = array<i64: 16, 32>}, {pipeline_mode = #tpu.pipeline_mode<synchronous>, transform_indices = @transform_1, window_bounds = array<i64: 32, 32>}, {pipeline_mode = #tpu.pipeline_mode<synchronous>, transform_indices = @transform_2, window_bounds = array<i64: 1, 32>}, {pipeline_mode = #tpu.pipeline_mode<synchronous>, transform_indices = @transform_3, window_bounds = array<i64: 1, 32>}, {transform_indices = @transform_4, window_bounds = array<i64: 1>}, {transform_indices = @transform_5, window_bounds = array<i64: 1, 16>}]} {
    %c0 = arith.constant 0 : index
    %c0_0 = arith.constant 0 : index
    %0 = vector.load %arg1[%c0, %c0_0] : memref<16x32xf32, #tpu.memory_space<vmem>>, vector<16x32xf32>
    %1 = arith.truncf %0 : vector<16x32xf32> to vector<16x32xbf16>
    %c0_1 = arith.constant 0 : index
    %c0_2 = arith.constant 0 : index
    %2 = vector.load %arg2[%c0_1, %c0_2] : memref<32x32xbf16, #tpu.memory_space<vmem>>, vector<32x32xbf16>
    %cst = arith.constant dense<0.000000e+00> : vector<16x32xf32>
    %3 = tpu.matmul %1, %2, %cst {dimension_numbers = #tpu.dot_dimension_numbers<[1], [0], [0], [1], [0, 0, 1, 1], [], []>} : vector<16x32xbf16>, vector<32x32xbf16>, vector<16x32xf32> -> vector<16x32xf32>
    %c0_3 = arith.constant 0 : index
    %c0_4 = arith.constant 0 : index
    %4 = vector.load %arg3[%c0_3, %c0_4] : memref<1x32xf32, #tpu.memory_space<vmem>>, vector<1x32xf32>
    %5 = vector.broadcast %4 : vector<1x32xf32> to vector<16x32xf32>
    %6 = arith.addf %3, %5 : vector<16x32xf32>
    %7 = math.tanh %6 : vector<16x32xf32>
    %c0_5 = arith.constant 0 : index
    %c0_6 = arith.constant 0 : index
    %8 = vector.load %arg4[%c0_5, %c0_6] : memref<1x32xf32, #tpu.memory_space<vmem>>, vector<1x32xf32>
    %9 = vector.broadcast %8 : vector<1x32xf32> to vector<16x32xf32>
    %10 = arith.mulf %7, %9 : vector<16x32xf32>
    %cst_7 = arith.constant dense<0.000000e+00> : vector<16xf32>
    %11 = vector.multi_reduction <add>, %10, %cst_7 [1] : vector<16x32xf32> to vector<16xf32>
    %c0_8 = arith.constant 0 : index
    %12 = memref.load %arg5[%c0_8] : memref<1xf32, #tpu.memory_space<smem>>
    %13 = vector.broadcast %12 : f32 to vector<16xf32>
    %14 = arith.addf %11, %13 : vector<16xf32>
    %15 = vector.shape_cast %14 : vector<16xf32> to vector<1x16xf32>
    %c0_9 = arith.constant 0 : index
    %c0_10 = arith.constant 0 : index
    %16 = vector.load %arg6[%c0_9, %c0_10] : memref<1x16xf32, #tpu.memory_space<vmem>>, vector<1x16xf32>
    tpu.vector_store %arg6[%c0_9, %c0_10], %15 {strides = array<i32>} : memref<1x16xf32, #tpu.memory_space<vmem>>, vector<1x16xf32>,
    return
  }
  func.func @transform_0(%arg0: i32) -> (i32, i32) {
    %c0_i32 = arith.constant 0 : i32
    %c0_i32_0 = arith.constant 0 : i32
    return %arg0, %c0_i32 : i32, i32
  }
  func.func @transform_1(%arg0: i32) -> (i32, i32) {
    %c0_i32 = arith.constant 0 : i32
    %c0_i32_0 = arith.constant 0 : i32
    %c0_i32_1 = arith.constant 0 : i32
    return %c0_i32, %c0_i32_0 : i32, i32
  }
  func.func @transform_2(%arg0: i32) -> (i32, i32) {
    %c0_i32 = arith.constant 0 : i32
    %c0_i32_0 = arith.constant 0 : i32
    %c0_i32_1 = arith.constant 0 : i32
    return %c0_i32, %c0_i32_0 : i32, i32
  }
  func.func @transform_3(%arg0: i32) -> (i32, i32) {
    %c0_i32 = arith.constant 0 : i32
    %c0_i32_0 = arith.constant 0 : i32
    %c0_i32_1 = arith.constant 0 : i32
    return %c0_i32, %c0_i32_0 : i32, i32
  }
  func.func @transform_4(%arg0: i32) -> i32 {
    %c0_i32 = arith.constant 0 : i32
    %c0_i32_0 = arith.constant 0 : i32
    return %c0_i32 : i32
  }
  func.func @transform_5(%arg0: i32) -> (i32, i32) {
    %c0_i32 = arith.constant 0 : i32
    %c0_i32_0 = arith.constant 0 : i32
    return %c0_i32, %arg0 : i32, i32
  }
}

module attributes {stable_mosaic.version = 11 : i64} {
  func.func @_head_kernel(%arg0: i32, %arg1: memref<16x32xf32, #tpu.memory_space<vmem>>, %arg2: memref<32x32xbf16, #tpu.memory_space<vmem>>, %arg3: memref<1x32xf32, #tpu.memory_space<vmem>>, %arg4: memref<1x32xf32, #tpu.memory_space<vmem>>, %arg5: memref<1xf32, #tpu.memory_space<smem>>, %arg6: memref<1x16xf32, #tpu.memory_space<vmem>>) attributes {dimension_semantics = [#tpu.dimension_semantics<parallel>], iteration_bounds = array<i64: 1>, scalar_prefetch = 0 : i64, scratch_operands = 0 : i64, tpu.core_type = #tpu.core_type<tc>, window_params = [{transform_indices = @transform_0, window_bounds = array<i64: 16, 32>}, {pipeline_mode = #tpu.pipeline_mode<synchronous>, transform_indices = @transform_1, window_bounds = array<i64: 32, 32>}, {pipeline_mode = #tpu.pipeline_mode<synchronous>, transform_indices = @transform_2, window_bounds = array<i64: 1, 32>}, {pipeline_mode = #tpu.pipeline_mode<synchronous>, transform_indices = @transform_3, window_bounds = array<i64: 1, 32>}, {transform_indices = @transform_4, window_bounds = array<i64: 1>}, {transform_indices = @transform_5, window_bounds = array<i64: 1, 16>}]} {
    %c0 = arith.constant 0 : index
    %c0_0 = arith.constant 0 : index
    %0 = vector.load %arg1[%c0, %c0_0] : memref<16x32xf32, #tpu.memory_space<vmem>>, vector<16x32xf32>
    %1 = arith.truncf %0 : vector<16x32xf32> to vector<16x32xbf16>
    %c0_1 = arith.constant 0 : index
    %c0_2 = arith.constant 0 : index
    %2 = vector.load %arg2[%c0_1, %c0_2] : memref<32x32xbf16, #tpu.memory_space<vmem>>, vector<32x32xbf16>
    %cst = arith.constant dense<0.000000e+00> : vector<16x32xf32>
    %3 = tpu.matmul %1, %2, %cst {dimension_numbers = #tpu.dot_dimension_numbers<[1], [0], [0], [1], [0, 0, 1, 1], [], []>} : vector<16x32xbf16>, vector<32x32xbf16>, vector<16x32xf32> -> vector<16x32xf32>
    %c0_3 = arith.constant 0 : index
    %c0_4 = arith.constant 0 : index
    %4 = vector.load %arg3[%c0_3, %c0_4] : memref<1x32xf32, #tpu.memory_space<vmem>>, vector<1x32xf32>
    %5 = vector.broadcast %4 : vector<1x32xf32> to vector<16x32xf32>
    %6 = arith.addf %3, %5 : vector<16x32xf32>
    %7 = math.tanh %6 : vector<16x32xf32>
    %c0_5 = arith.constant 0 : index
    %c0_6 = arith.constant 0 : index
    %8 = vector.load %arg4[%c0_5, %c0_6] : memref<1x32xf32, #tpu.memory_space<vmem>>, vector<1x32xf32>
    %9 = vector.broadcast %8 : vector<1x32xf32> to vector<16x32xf32>
    %10 = arith.mulf %7, %9 : vector<16x32xf32>
    %cst_7 = arith.constant dense<0.000000e+00> : vector<16xf32>
    %11 = vector.multi_reduction <add>, %10, %cst_7 [1] : vector<16x32xf32> to vector<16xf32>
    %c0_8 = arith.constant 0 : index
    %12 = memref.load %arg5[%c0_8] : memref<1xf32, #tpu.memory_space<smem>>
    %13 = vector.broadcast %12 : f32 to vector<16xf32>
    %14 = arith.addf %11, %13 : vector<16xf32>
    %15 = vector.shape_cast %14 : vector<16xf32> to vector<1x16xf32>
    %c0_9 = arith.constant 0 : index
    %c0_10 = arith.constant 0 : index
    %16 = vector.load %arg6[%c0_9, %c0_10] : memref<1x16xf32, #tpu.memory_space<vmem>>, vector<1x16xf32>
    tpu.vector_store %arg6[%c0_9, %c0_10], %15 {strides = array<i32>} : memref<1x16xf32, #tpu.memory_space<vmem>>, vector<1x16xf32>,
    return
  }
  func.func @transform_0(%arg0: i32) -> (i32, i32) {
    %c0_i32 = arith.constant 0 : i32
    %c0_i32_0 = arith.constant 0 : i32
    return %arg0, %c0_i32 : i32, i32
  }
  func.func @transform_1(%arg0: i32) -> (i32, i32) {
    %c0_i32 = arith.constant 0 : i32
    %c0_i32_0 = arith.constant 0 : i32
    %c0_i32_1 = arith.constant 0 : i32
    return %c0_i32, %c0_i32_0 : i32, i32
  }
  func.func @transform_2(%arg0: i32) -> (i32, i32) {
    %c0_i32 = arith.constant 0 : i32
    %c0_i32_0 = arith.constant 0 : i32
    %c0_i32_1 = arith.constant 0 : i32
    return %c0_i32, %c0_i32_0 : i32, i32
  }
  func.func @transform_3(%arg0: i32) -> (i32, i32) {
    %c0_i32 = arith.constant 0 : i32
    %c0_i32_0 = arith.constant 0 : i32
    %c0_i32_1 = arith.constant 0 : i32
    return %c0_i32, %c0_i32_0 : i32, i32
  }
  func.func @transform_4(%arg0: i32) -> i32 {
    %c0_i32 = arith.constant 0 : i32
    %c0_i32_0 = arith.constant 0 : i32
    return %c0_i32 : i32
  }
  func.func @transform_5(%arg0: i32) -> (i32, i32) {
    %c0_i32 = arith.constant 0 : i32
    %c0_i32_0 = arith.constant 0 : i32
    return %c0_i32, %arg0 : i32, i32
  }
}

</mosaic_0001>

<llo_original>
// kernel: tpu_custom_call.1
$region0: #{tpu_custom_call.1}
  #allocation0 [shape = 'u32[]', space=smem, size = 0x4, offset = 0x4, fixed_abs, tag = 'smem constant byte address 0x4 - core index']
  #allocation1 [shape = 'u32[144,128]{1,0:T(1,128)}', space=vmem, size = 0x12000, scoped, tag = 'internal scratch']
  #allocation2 [shape = 'f32[1]{0:T(128)S(6)}', space=smem, size = 0x200, scoped, tag = 'scoped memory for tpu_custom_call.1']
  %s0 = inlined_call_operand.hbm [shape: f32[16,32], index: 0, kind: input, shape index: {}]
  %s1 = inlined_call_operand.hbm [shape: bf16[32,32], index: 1, kind: input, shape index: {}]
  %s2 = inlined_call_operand.vmem [shape: f32[1,32], index: 2, kind: input, shape index: {}]
  %s3 = inlined_call_operand.vmem [shape: f32[1,32], index: 3, kind: input, shape index: {}]
  %s4 = inlined_call_operand.<no memory space> [shape: f32[1], index: 4, kind: input, shape index: {}]
  %s5 = inlined_call_operand.hbm [shape: f32[1,16], index: 5, kind: output, shape index: {}]
  %s6 = sld [smem:[#allocation0]]
  $region38: #{tpu_custom_call.1} parent=0
    _
  %s8 = ssub.s32 1, %s6
  %s9 = scalar_select 0, %s8, %s6
  %10 = sst [smem:[#allocation2]] %s4
  $region1: #{tpu_custom_call.1} parent=0
    #allocation3 [shape = 'u8[8192]{0}', space=vmem, size = 0x2000, scoped, tag = 'input window, operand 0, single buffered']
    #allocation4 [shape = 's32[1]{0}', space=sflag, size = 0x4, scoped, tag = 'scoped memory for tpu_custom_call.1']
    #allocation5 [shape = 's32[1]{0}', space=sflag, size = 0x4, scoped, tag = 'scoped memory for tpu_custom_call.1']
    #allocation6 [shape = 'u8[8192]{0}', space=vmem, size = 0x2000, scoped, tag = 'input window, operand 1, single buffered']
    #allocation7 [shape = 's32[1]{0}', space=sflag, size = 0x4, scoped, tag = 'scoped memory for tpu_custom_call.1']
    #allocation8 [shape = 'u8[512]{0}', space=vmem, size = 0x400, scoped, tag = 'output window, operand 0, single buffered']
    %11 = vsyncpa [#allocation4], 0
    %12 = vsyncpa [#allocation7], 0
    %13 = vsyncpa [#allocation5], 0
    // Predicated region
    $region2: #{tpu_custom_call.1} parent=1 // pred_check
      _
    $region3: #{tpu_custom_call.1} parent=1 // pred_check_branch
      %15 = sbr.rel (0) target = $region5
    $region4: #{tpu_custom_call.1} parent=1 // pred_region
      %s17 = ssub.s32 256, 256
      %18 = vsyncadd [#allocation4], %s17
      %s19 = sshll.u32 [#allocation3], 4
      %s20 = int_to_ptr.vmem [resolvable:$true] %s19
      %25 = dma.hbm_to_vmem [thread:$0]  %s0, 256, %s20, [#allocation4], 128, 128, 8
    $region5: #{tpu_custom_call.1} parent=1 // pred_fallthru
      _
    // Predicated region
    $region6: #{tpu_custom_call.1} parent=1 // pred_check
      _
    $region7: #{tpu_custom_call.1} parent=1 // pred_check_branch
      %27 = sbr.rel (0) target = $region9
    $region8: #{tpu_custom_call.1} parent=1 // pred_region
      %s29 = ssub.s32 256, 256
      %30 = vsyncadd [#allocation7], %s29
      %s31 = sshll.u32 [#allocation6], 4
      %s32 = int_to_ptr.vmem [resolvable:$true] %s31
      %37 = dma.hbm_to_vmem [thread:$0]  %s1, 256, %s32, [#allocation7], 64, 64, 4
    $region9: #{tpu_custom_call.1} parent=1 // pred_fallthru
      _
    // Predicated region
    $region10: #{tpu_custom_call.1} parent=1 // pred_check
      _
    $region11: #{tpu_custom_call.1} parent=1 // pred_check_branch
      %39 = sbr.rel (0) target = $region13
    $region12: #{tpu_custom_call.1} parent=1 // pred_region
      _
    $region13: #{tpu_custom_call.1} parent=1 // pred_fallthru
      _
    // Predicated region
    $region14: #{tpu_custom_call.1} parent=1 // pred_check
      _
    $region15: #{tpu_custom_call.1} parent=1 // pred_check_branch
      %41 = sbr.rel (0) target = $region17
    $region16: #{tpu_custom_call.1} parent=1 // pred_region
      _
    $region17: #{tpu_custom_call.1} parent=1 // pred_fallthru
      _
    // Predicated region
    $region18: #{tpu_custom_call.1} parent=1 // pred_check
      _
    $region19: #{tpu_custom_call.1} parent=1 // pred_check_branch
      %43 = sbr.rel (0) target = $region21
    $region20: #{tpu_custom_call.1} parent=1 // pred_region
      _
    $region21: #{tpu_custom_call.1} parent=1 // pred_fallthru
      _
    // Predicated region
    $region22: #{tpu_custom_call.1} parent=1 // pred_check
      _
    $region23: #{tpu_custom_call.1} parent=1 // pred_check_branch
      %45 = sbr.rel (0) target = $region25
    $region24: #{tpu_custom_call.1} parent=1 // pred_region
      %46 = dma.done [#allocation4], 256
    $region25: #{tpu_custom_call.1} parent=1 // pred_fallthru
      _
    // Predicated region
    $region26: #{tpu_custom_call.1} parent=1 // pred_check
      _
    $region27: #{tpu_custom_call.1} parent=1 // pred_check_branch
      %48 = sbr.rel (0) target = $region29
    $region28: #{tpu_custom_call.1} parent=1 // pred_region
      %49 = dma.done [#allocation7], 256
    $region29: #{tpu_custom_call.1} parent=1 // pred_fallthru
      _
    %v51 = vld [vmem:[#allocation3] sm:$0xff]
    %v52 = vld [vmem:[#allocation3 + $0x8] sm:$0xff]
    %v53 = vpack.c.bf16 %v52, %v51
    %v54 = vld [vmem:[#allocation6] sm:$0xf]
    %v55 = vld [vmem:[#allocation6 + $0x4] sm:$0xf]
    %v56 = vld [vmem:[#allocation6 + $0x8] sm:$0xf]
    %v57 = vld [vmem:[#allocation6 + $0xc] sm:$0xf]
    %v58 = vld [vmem:[%s2] sm:$0x1]
    %v60 = vlaneseq
    %v61 = vshrl.u32 %v60, 7
    %v62 = vsub.s32 0, %v61
    %v63 = vrot.slane %v58, %v62
    %v69 = vunpack.c.l.b16 %v54
    %v70 = vunpack.c.l.b16 %v55
    %v71 = vunpack.c.l.b16 %v56
    %v72 = vunpack.c.l.b16 %v57
    %v73 = vpack.c.b16 %v70, %v69
    %v74 = vpack.c.b16 %v72, %v71
    %vm77 = vcmask 261120
    %v79 = vsel %vm77, %v53, 0
    %81 = vmatprep.subr.bf16.mxu0 0
    %82 = vmatpush1.bf16.msra.mxu0 %v73
    %83 = vmatprep.subr.bf16.mxu0 0
    %84 = vmatpush1.bf16.msra.mxu0 %v74
    %85 = vmatprep.subr.bf16.mxu0 0
    %86 = vmatpush1.bf16.msra.mxu0 0
    %87 = vmatprep.subr.bf16.mxu0 0
    %88 = vmatpush1.bf16.msra.mxu0 0
    %89 = vmatprep.subr.bf16.mxu0 0
    %90 = vmatpush1.bf16.msra.mxu0 0
    %91 = vmatprep.subr.bf16.mxu0 0
    %92 = vmatpush1.bf16.msra.mxu0 0
    %93 = vmatprep.subr.bf16.mxu0 0
    %94 = vmatpush1.bf16.msra.mxu0 0
    %95 = vmatprep.subr.bf16.mxu0 0
    %96 = vmatpush1.bf16.msra.mxu0 0
    %97 = vmatprep.subr.bf16.mxu0 0
    %98 = vmatpush1.bf16.msra.mxu0 0
    %99 = vmatprep.subr.bf16.mxu0 0
    %100 = vmatpush1.bf16.msra.mxu0 0
    %101 = vmatprep.subr.bf16.mxu0 0
    %102 = vmatpush1.bf16.msra.mxu0 0
    %103 = vmatprep.subr.bf16.mxu0 0
    %104 = vmatpush1.bf16.msra.mxu0 0
    %105 = vmatprep.subr.bf16.mxu0 0
    %106 = vmatpush1.bf16.msra.mxu0 0
    %107 = vmatprep.subr.bf16.mxu0 0
    %108 = vmatpush1.bf16.msra.mxu0 0
    %109 = vmatprep.subr.bf16.mxu0 0
    %110 = vmatpush1.bf16.msra.mxu0 0
    %111 = vmatprep.subr.bf16.mxu0 0
    %112 = vmatpush1.bf16.msra.mxu0 0
    %113 = vmatprep.mubr.bf16.mxu0 0
    %114 = vmatmul.mubr.bf16.gmra.mrb[0].mxu0 %v79
    %v115 = vpop.f32.mrb[0].mxu0
    %v116 = vadd.f32 %v63, %v115
    %v117 = vpop.f32.mrb[0].mxu0
    %v118 = vpop.f32.mrb[0].mxu0
    %v119 = vadd.f32 %v63, %v118
    %v120 = vpop.f32.mrb[0].mxu0
    %121 = vdwg.mxu0
    %v122 = vtanh.pop %v116
    %v123 = vtanh.pop %v119
    %v124 = vld [vmem:[%s3] sm:$0x1]
    %v126 = vlaneseq
    %v127 = vshrl.u32 %v126, 7
    %v128 = vsub.s32 0, %v127
    %v129 = vrot.slane %v124, %v128
    %v131 = vmul.f32 %v122, %v129
    %v132 = vmul.f32 %v123, %v129
    %v133 = vsel %vm77, %v131, 0.0
    %134 = vadd.xlane.f32.xlu0 %v133
    %v135 = vpop.xlane.xlu0 %134
    %v136 = vsel %vm77, %v132, 0.0
    %137 = vadd.xlane.f32.xlu0 %v136
    %v138 = vpop.xlane.xlu0 %137
    %s139 = sld [smem:[#allocation2]]
    %v140 = vstv %s139
    %v141 = vadd.f32 %v135, %v140
    %v142 = vadd.f32 %v138, %v140
    %v145 = vlaneseq
    %v146 = vand.u32 %v145, 127
    %v147 = vlaneseq
    %v148 = vshrl.u32 %v147, 7
    %v149 = vsub.s32 %v146, %v148
    %v150 = vrot.slane %v141, %v149
    %v151 = vadd.s32 %v146, 4294967288
    %v152 = vlaneseq
    %v153 = vshrl.u32 %v152, 7
    %v154 = vsub.s32 %v151, %v153
    %v155 = vrot.slane %v142, %v154
    %vm156 = vcmask 130112
    %v157 = vsel %vm156, %v155, %v150
    %vm159 = vcmask 122880
    %160 = vst.msk [vmem:[#allocation8] sm:$0x1] %vm159, %v157
    // Predicated region
    $region30: #{tpu_custom_call.1} parent=1 // pred_check
      _
    $region31: #{tpu_custom_call.1} parent=1 // pred_check_branch
      %162 = sbr.rel (0) target = $region33
    $region32: #{tpu_custom_call.1} parent=1 // pred_region
      %s164 = ssub.s32 16, 16
      %165 = vsyncadd [#allocation5], %s164
      %s167 = sshll.u32 [#allocation8], 4
      %s168 = int_to_ptr.vmem [resolvable:$true] %s167
      %170 = dma.vmem_to_hbm [thread:$0]  %s168, 16, %s5, [#allocation5]
    $region33: #{tpu_custom_call.1} parent=1 // pred_fallthru
      _
    // Predicated region
    $region34: #{tpu_custom_call.1} parent=1 // pred_check
      _
    $region35: #{tpu_custom_call.1} parent=1 // pred_check_branch
      %172 = sbr.rel (0) target = $region37
    $region36: #{tpu_custom_call.1} parent=1 // pred_region
      %173 = dma.done [#allocation5], 16
    $region37: #{tpu_custom_call.1} parent=1 // pred_fallthru
      _
    %174 = vsyncpa [#allocation4], 1
    %175 = vsyncpa [#allocation7], 1
    %176 = vsyncpa [#allocation5], 1

// kernel: tpu_custom_call.1
$region0: #{tpu_custom_call.1}
  #allocation0 [shape = 'u32[]', space=smem, size = 0x4, offset = 0x4, fixed_abs, tag = 'smem constant byte address 0x4 - core index']
  #allocation1 [shape = 'u32[144,128]{1,0:T(1,128)}', space=vmem, size = 0x12000, scoped, tag = 'internal scratch']
  #allocation2 [shape = 'f32[1]{0:T(128)S(6)}', space=smem, size = 0x200, scoped, tag = 'scoped memory for tpu_custom_call.1']
  %s0 = inlined_call_operand.hbm [shape: f32[16,32], index: 0, kind: input, shape index: {}]
  %s1 = inlined_call_operand.hbm [shape: bf16[32,32], index: 1, kind: input, shape index: {}]
  %s2 = inlined_call_operand.vmem [shape: f32[1,32], index: 2, kind: input, shape index: {}]
  %s3 = inlined_call_operand.vmem [shape: f32[1,32], index: 3, kind: input, shape index: {}]
  %s4 = inlined_call_operand.<no memory space> [shape: f32[1], index: 4, kind: input, shape index: {}]
  %s5 = inlined_call_operand.hbm [shape: f32[1,16], index: 5, kind: output, shape index: {}]
  %s6 = sld [smem:[#allocation0]]
  $region38: #{tpu_custom_call.1} parent=0
    _
  %s8 = ssub.s32 1, %s6
  %s9 = scalar_select 0, %s8, %s6
  %10 = sst [smem:[#allocation2]] %s4
  $region1: #{tpu_custom_call.1} parent=0
    #allocation3 [shape = 'u8[8192]{0}', space=vmem, size = 0x2000, scoped, tag = 'input window, operand 0, single buffered']
    #allocation4 [shape = 's32[1]{0}', space=sflag, size = 0x4, scoped, tag = 'scoped memory for tpu_custom_call.1']
    #allocation5 [shape = 's32[1]{0}', space=sflag, size = 0x4, scoped, tag = 'scoped memory for tpu_custom_call.1']
    #allocation6 [shape = 'u8[8192]{0}', space=vmem, size = 0x2000, scoped, tag = 'input window, operand 1, single buffered']
    #allocation7 [shape = 's32[1]{0}', space=sflag, size = 0x4, scoped, tag = 'scoped memory for tpu_custom_call.1']
    #allocation8 [shape = 'u8[512]{0}', space=vmem, size = 0x400, scoped, tag = 'output window, operand 0, single buffered']
    %11 = vsyncpa [#allocation4], 0
    %12 = vsyncpa [#allocation7], 0
    %13 = vsyncpa [#allocation5], 0
    // Predicated region
    $region2: #{tpu_custom_call.1} parent=1 // pred_check
      _
    $region3: #{tpu_custom_call.1} parent=1 // pred_check_branch
      %15 = sbr.rel (0) target = $region5
    $region4: #{tpu_custom_call.1} parent=1 // pred_region
      %s17 = ssub.s32 256, 256
      %18 = vsyncadd [#allocation4], %s17
      %s19 = sshll.u32 [#allocation3], 4
      %s20 = int_to_ptr.vmem [resolvable:$true] %s19
      %25 = dma.hbm_to_vmem [thread:$0]  %s0, 256, %s20, [#allocation4], 128, 128, 8
    $region5: #{tpu_custom_call.1} parent=1 // pred_fallthru
      _
    // Predicated region
    $region6: #{tpu_custom_call.1} parent=1 // pred_check
      _
    $region7: #{tpu_custom_call.1} parent=1 // pred_check_branch
      %27 = sbr.rel (0) target = $region9
    $region8: #{tpu_custom_call.1} parent=1 // pred_region
      %s29 = ssub.s32 256, 256
      %30 = vsyncadd [#allocation7], %s29
      %s31 = sshll.u32 [#allocation6], 4
      %s32 = int_to_ptr.vmem [resolvable:$true] %s31
      %37 = dma.hbm_to_vmem [thread:$0]  %s1, 256, %s32, [#allocation7], 64, 64, 4
    $region9: #{tpu_custom_call.1} parent=1 // pred_fallthru
      _
    // Predicated region
    $region10: #{tpu_custom_call.1} parent=1 // pred_check
      _
    $region11: #{tpu_custom_call.1} parent=1 // pred_check_branch
      %39 = sbr.rel (0) target = $region13
    $region12: #{tpu_custom_call.1} parent=1 // pred_region
      _
    $region13: #{tpu_custom_call.1} parent=1 // pred_fallthru
      _
    // Predicated region
    $region14: #{tpu_custom_call.1} parent=1 // pred_check
      _
    $region15: #{tpu_custom_call.1} parent=1 // pred_check_branch
      %41 = sbr.rel (0) target = $region17
    $region16: #{tpu_custom_call.1} parent=1 // pred_region
      _
    $region17: #{tpu_custom_call.1} parent=1 // pred_fallthru
      _
    // Predicated region
    $region18: #{tpu_custom_call.1} parent=1 // pred_check
      _
    $region19: #{tpu_custom_call.1} parent=1 // pred_check_branch
      %43 = sbr.rel (0) target = $region21
    $region20: #{tpu_custom_call.1} parent=1 // pred_region
      _
    $region21: #{tpu_custom_call.1} parent=1 // pred_fallthru
      _
    // Predicated region
    $region22: #{tpu_custom_call.1} parent=1 // pred_check
      _
    $region23: #{tpu_custom_call.1} parent=1 // pred_check_branch
      %45 = sbr.rel (0) target = $region25
    $region24: #{tpu_custom_call.1} parent=1 // pred_region
      %46 = dma.done [#allocation4], 256
    $region25: #{tpu_custom_call.1} parent=1 // pred_fallthru
      _
    // Predicated region
    $region26: #{tpu_custom_call.1} parent=1 // pred_check
      _
    $region27: #{tpu_custom_call.1} parent=1 // pred_check_branch
      %48 = sbr.rel (0) target = $region29
    $region28: #{tpu_custom_call.1} parent=1 // pred_region
      %49 = dma.done [#allocation7], 256
    $region29: #{tpu_custom_call.1} parent=1 // pred_fallthru
      _
    %v51 = vld [vmem:[#allocation3] sm:$0xff]
    %v52 = vld [vmem:[#allocation3 + $0x8] sm:$0xff]
    %v53 = vpack.c.bf16 %v52, %v51
    %v54 = vld [vmem:[#allocation6] sm:$0xf]
    %v55 = vld [vmem:[#allocation6 + $0x4] sm:$0xf]
    %v56 = vld [vmem:[#allocation6 + $0x8] sm:$0xf]
    %v57 = vld [vmem:[#allocation6 + $0xc] sm:$0xf]
    %v58 = vld [vmem:[%s2] sm:$0x1]
    %v60 = vlaneseq
    %v61 = vshrl.u32 %v60, 7
    %v62 = vsub.s32 0, %v61
    %v63 = vrot.slane %v58, %v62
    %v69 = vunpack.c.l.b16 %v54
    %v70 = vunpack.c.l.b16 %v55
    %v71 = vunpack.c.l.b16 %v56
    %v72 = vunpack.c.l.b16 %v57
    %v73 = vpack.c.b16 %v70, %v69
    %v74 = vpack.c.b16 %v72, %v71
    %vm77 = vcmask 261120
    %v79 = vsel %vm77, %v53, 0
    %81 = vmatprep.subr.bf16.mxu0 0
    %82 = vmatpush1.bf16.msra.mxu0 %v73
    %83 = vmatprep.subr.bf16.mxu0 0
    %84 = vmatpush1.bf16.msra.mxu0 %v74
    %85 = vmatprep.subr.bf16.mxu0 0
    %86 = vmatpush1.bf16.msra.mxu0 0
    %87 = vmatprep.subr.bf16.mxu0 0
    %88 = vmatpush1.bf16.msra.mxu0 0
    %89 = vmatprep.subr.bf16.mxu0 0
    %90 = vmatpush1.bf16.msra.mxu0 0
    %91 = vmatprep.subr.bf16.mxu0 0
    %92 = vmatpush1.bf16.msra.mxu0 0
    %93 = vmatprep.subr.bf16.mxu0 0
    %94 = vmatpush1.bf16.msra.mxu0 0
    %95 = vmatprep.subr.bf16.mxu0 0
    %96 = vmatpush1.bf16.msra.mxu0 0
    %97 = vmatprep.subr.bf16.mxu0 0
    %98 = vmatpush1.bf16.msra.mxu0 0
    %99 = vmatprep.subr.bf16.mxu0 0
    %100 = vmatpush1.bf16.msra.mxu0 0
    %101 = vmatprep.subr.bf16.mxu0 0
    %102 = vmatpush1.bf16.msra.mxu0 0
    %103 = vmatprep.subr.bf16.mxu0 0
    %104 = vmatpush1.bf16.msra.mxu0 0
    %105 = vmatprep.subr.bf16.mxu0 0
    %106 = vmatpush1.bf16.msra.mxu0 0
    %107 = vmatprep.subr.bf16.mxu0 0
    %108 = vmatpush1.bf16.msra.mxu0 0
    %109 = vmatprep.subr.bf16.mxu0 0
    %110 = vmatpush1.bf16.msra.mxu0 0
    %111 = vmatprep.subr.bf16.mxu0 0
    %112 = vmatpush1.bf16.msra.mxu0 0
    %113 = vmatprep.mubr.bf16.mxu0 0
    %114 = vmatmul.mubr.bf16.gmra.mrb[0].mxu0 %v79
    %v115 = vpop.f32.mrb[0].mxu0
    %v116 = vadd.f32 %v63, %v115
    %v117 = vpop.f32.mrb[0].mxu0
    %v118 = vpop.f32.mrb[0].mxu0
    %v119 = vadd.f32 %v63, %v118
    %v120 = vpop.f32.mrb[0].mxu0
    %121 = vdwg.mxu0
    %v122 = vtanh.pop %v116
    %v123 = vtanh.pop %v119
    %v124 = vld [vmem:[%s3] sm:$0x1]
    %v126 = vlaneseq
    %v127 = vshrl.u32 %v126, 7
    %v128 = vsub.s32 0, %v127
    %v129 = vrot.slane %v124, %v128
    %v131 = vmul.f32 %v122, %v129
    %v132 = vmul.f32 %v123, %v129
    %v133 = vsel %vm77, %v131, 0.0
    %134 = vadd.xlane.f32.xlu0 %v133
    %v135 = vpop.xlane.xlu0 %134
    %v136 = vsel %vm77, %v132, 0.0
    %137 = vadd.xlane.f32.xlu0 %v136
    %v138 = vpop.xlane.xlu0 %137
    %s139 = sld [smem:[#allocation2]]
    %v140 = vstv %s139
    %v141 = vadd.f32 %v135, %v140
    %v142 = vadd.f32 %v138, %v140
    %v145 = vlaneseq
    %v146 = vand.u32 %v145, 127
    %v147 = vlaneseq
    %v148 = vshrl.u32 %v147, 7
    %v149 = vsub.s32 %v146, %v148
    %v150 = vrot.slane %v141, %v149
    %v151 = vadd.s32 %v146, 4294967288
    %v152 = vlaneseq
    %v153 = vshrl.u32 %v152, 7
    %v154 = vsub.s32 %v151, %v153
    %v155 = vrot.slane %v142, %v154
    %vm156 = vcmask 130112
    %v157 = vsel %vm156, %v155, %v150
    %vm159 = vcmask 122880
    %160 = vst.msk [vmem:[#allocation8] sm:$0x1] %vm159, %v157
    // Predicated region
    $region30: #{tpu_custom_call.1} parent=1 // pred_check
      _
    $region31: #{tpu_custom_call.1} parent=1 // pred_check_branch
      %162 = sbr.rel (0) target = $region33
    $region32: #{tpu_custom_call.1} parent=1 // pred_region
      %s164 = ssub.s32 16, 16
      %165 = vsyncadd [#allocation5], %s164
      %s167 = sshll.u32 [#allocation8], 4
      %s168 = int_to_ptr.vmem [resolvable:$true] %s167
      %170 = dma.vmem_to_hbm [thread:$0]  %s168, 16, %s5, [#allocation5]
    $region33: #{tpu_custom_call.1} parent=1 // pred_fallthru
      _
    // Predicated region
    $region34: #{tpu_custom_call.1} parent=1 // pred_check
      _
    $region35: #{tpu_custom_call.1} parent=1 // pred_check_branch
      %172 = sbr.rel (0) target = $region37
    $region36: #{tpu_custom_call.1} parent=1 // pred_region
      %173 = dma.done [#allocation5], 16
    $region37: #{tpu_custom_call.1} parent=1 // pred_fallthru
      _
    %174 = vsyncpa [#allocation4], 1
    %175 = vsyncpa [#allocation7], 1
    %176 = vsyncpa [#allocation5], 1

</llo_original>
